<compile_context>
chip_gen: v7x
topology: tpu7x:2x2x1
jax: 0.10.0
libtpu: 0.0.40
codegen_flags: <defaults>
</compile_context>

<pallas_src>
import functools

import jax
import jax.numpy as jnp
import numpy as np
from jax.experimental import pallas as pl
from jax.experimental.pallas import tpu as pltpu


# ---------------------------------------------------------------------------
# Projection kernel: (N, D) @ (D, H) -> (N, H)   (hoisted W_q / W_k linears)
# ---------------------------------------------------------------------------
def _proj_kernel(x_ref, w_ref, o_ref):
    o_ref[...] = jnp.dot(x_ref[...], w_ref[...],
                         preferred_element_type=jnp.float32)


def _project(x2d, w, *, block_rows=512):
    N, D = x2d.shape
    H = w.shape[1]
    rt = N if N <= block_rows else block_rows
    return pl.pallas_call(
        _proj_kernel,
        out_shape=jax.ShapeDtypeStruct((N, H), jnp.float32),
        grid_spec=pltpu.PrefetchScalarGridSpec(
            num_scalar_prefetch=0,
            grid=(pl.cdiv(N, rt),),
            in_specs=[pl.BlockSpec((rt, D), lambda i: (i, 0)),
                      pl.BlockSpec((D, H), lambda i: (0, 0))],
            out_specs=pl.BlockSpec((rt, H), lambda i: (i, 0))),
        compiler_params=pltpu.CompilerParams(
            dimension_semantics=("parallel",)),
    )(x2d, w)


# ---------------------------------------------------------------------------
# Attention kernel: batch-tile fused, K-tiled online (flash-style) softmax
# ---------------------------------------------------------------------------
def _additive_attn_kernel(qh_ref, kh_ref, v_ref, wv_ref, vlen_ref, o_ref,
                          m_s, l_s, acc_s, *, block_k):
    kv = pl.program_id(1)

    @pl.when(kv == 0)
    def _():
        m_s[...] = jnp.full_like(m_s, -jnp.inf)
        l_s[...] = jnp.zeros_like(l_s)
        acc_s[...] = jnp.zeros_like(acc_s)

    qh = qh_ref[...]                                  # (Bt, Q,  H) f32
    kh = kh_ref[...]                                  # (Bt, Kt, H) f32
    wv = wv_ref[...]                                  # (1, H)      f32

    # features = tanh(q.unsqueeze(2) + k.unsqueeze(1))  -> (Bt, Q, Kt, H)
    feat = jnp.tanh(qh[:, :, None, :] + kh[:, None, :, :])
    # scores = w_v(features).squeeze(-1)                -> (Bt, Q, Kt)
    scores = jnp.sum(feat * wv, axis=-1)

    # masked_softmax mask (1-D valid_lens: same mask for every query row)
    kpos = jax.lax.broadcasted_iota(jnp.int32, (1, 1, block_k), 2) + kv * block_k
    mask = kpos < vlen_ref[...]                       # (Bt, 1, Kt)
    scores = jnp.where(mask, scores, jnp.float32(-1000000.0))

    # online softmax over the key axis
    m_prev = m_s[...]                                          # (Bt, Q, 1)
    m_new = jnp.maximum(m_prev, jnp.max(scores, axis=-1, keepdims=True))
    alpha = jnp.exp(m_prev - m_new)
    p = jnp.exp(scores - m_new)                                # (Bt, Q, Kt)
    l_s[...] = alpha * l_s[...] + jnp.sum(p, axis=-1, keepdims=True)
    acc_s[...] = alpha * acc_s[...] + jnp.einsum(
        'bqk,bkd->bqd', p, v_ref[...], preferred_element_type=jnp.float32)
    m_s[...] = m_new

    @pl.when(kv == pl.num_programs(1) - 1)
    def _():
        inv_l = pl.reciprocal(l_s[...], approx=True)
        # (dropout == identity in eval mode)
        o_ref[...] = (acc_s[...] * inv_l).astype(o_ref.dtype)


def additive_attention(queries, keys, values, valid_lens, W_q, W_k, w_v,
                       *, block_b=None, block_k=None):
    """queries: (B,Q,Dq)  keys: (B,K,Dk)  values: (B,K,Dv)
       valid_lens: (B,) int32 (per-batch only)
       W_q: (Dq,H)  W_k: (Dk,H)  w_v: (H,1)   ->  (B,Q,Dv) float32"""
    assert valid_lens.ndim == 1, "only 1-D (per-batch) valid_lens supported"
    B, Q, Dq = queries.shape
    _, K, Dk = keys.shape
    _, _, Dv = values.shape
    H = W_q.shape[1]

    if block_b is None:
        block_b = B                               # fuse the whole batch per step
    if block_k is None:
        block_k = K if (K <= 512 or K % 512) else 512
    assert B % block_b == 0
    assert K % block_k == 0 and (block_k % 8 == 0 or block_k == K)
    # NOTE: keep block_b*Q*block_k*H*4 bytes (feat tile) well under VMEM
    # (<= ~16 MiB is safe on v7x's 64 MiB VMEM with double-buffered K/V tiles).

    # --- hoisted projections: one MXU matmul each over the flattened batch ---
    qh = _project(queries.reshape(B * Q, Dq), W_q).reshape(B, Q, H)
    kh = _project(keys.reshape(B * K, Dk), W_k).reshape(B, K, H)

    # --- lane-dense output: zero-pad the value feature dim to a 128 multiple ---
    Dvp = ((max(Dv, 1) + 127) // 128) * 128
    v_pad = values if Dvp == Dv else jnp.pad(values, ((0, 0), (0, 0), (0, Dvp - Dv)))

    wv_row = w_v.reshape(1, H).astype(jnp.float32)        # H on the lane axis
    vlen3 = valid_lens.reshape(B, 1, 1).astype(jnp.int32)

    grid = (B // block_b, K // block_k)
    kernel = functools.partial(_additive_attn_kernel, block_k=block_k)

    out = pl.pallas_call(
        kernel,
        out_shape=jax.ShapeDtypeStruct((B, Q, Dvp), jnp.float32),
        grid_spec=pltpu.PrefetchScalarGridSpec(
            num_scalar_prefetch=0,
            grid=grid,
            in_specs=[
                pl.BlockSpec((block_b, Q, H), lambda b, k: (b, 0, 0)),
                pl.BlockSpec((block_b, block_k, H), lambda b, k: (b, k, 0)),
                pl.BlockSpec((block_b, block_k, Dvp), lambda b, k: (b, k, 0)),
                pl.BlockSpec((1, H), lambda b, k: (0, 0)),
                pl.BlockSpec((block_b, 1, 1), lambda b, k: (b, 0, 0)),
            ],
            out_specs=pl.BlockSpec((block_b, Q, Dvp), lambda b, k: (b, 0, 0)),
            scratch_shapes=[
                pltpu.VMEM((block_b, Q, 1), jnp.float32),     # running max
                pltpu.VMEM((block_b, Q, 1), jnp.float32),     # running sum
                pltpu.VMEM((block_b, Q, Dvp), jnp.float32),   # accumulator
            ]),
        compiler_params=pltpu.CompilerParams(
            dimension_semantics=("parallel", "arbitrary")),
    )(qh, kh, v_pad, wv_row, vlen3)

    return out[:, :, :Dv]


def reference_additive_attention(queries, keys, values, valid_lens, W_q, W_k, w_v):
    qh = queries @ W_q
    kh = keys @ W_k
    feat = jnp.tanh(qh[:, :, None, :] + kh[:, None, :, :])
    scores = jnp.squeeze(feat @ w_v, -1)
    mask = jnp.arange(keys.shape[1])[None, None, :] < valid_lens[:, None, None]
    scores = jnp.where(mask, scores, -1000000.0)
    attn = jax.nn.softmax(scores, axis=-1)
    return attn @ values


if __name__ == "__main__":
    # Small shapes consistent with the module's forward
    B, Q, K = 2, 4, 16          # batch, num queries, num key-value pairs
    Dq, Dk, Dv = 20, 16, 8      # query_size, key_size, value feature dim
    H = 32                      # num_hiddens

    key = jax.random.PRNGKey(0)
    kq, kk, kv_, kwq, kwk, kwv = jax.random.split(key, 6)

    queries = jax.random.normal(kq, (B, Q, Dq), dtype=jnp.float32)
    keys_in = jax.random.normal(kk, (B, K, Dk), dtype=jnp.float32)
    values = jax.random.normal(kv_, (B, K, Dv), dtype=jnp.float32)
    valid_lens = jnp.array([5, 12], dtype=jnp.int32)   # crosses the K-tile boundary

    # Deterministic parameter init (nn.Linear(..., bias=False) weights, transposed)
    W_q = jax.random.normal(kwq, (Dq, H), dtype=jnp.float32) * (1.0 / np.sqrt(Dq))
    W_k = jax.random.normal(kwk, (Dk, H), dtype=jnp.float32) * (1.0 / np.sqrt(Dk))
    w_v = jax.random.normal(kwv, (H, 1), dtype=jnp.float32) * (1.0 / np.sqrt(H))

    out = additive_attention(queries, keys_in, values, valid_lens,
                             W_q, W_k, w_v, block_k=8)   # 2 K tiles -> online softmax
    out = jax.block_until_ready(out)

    ref = reference_additive_attention(queries, keys_in, values, valid_lens,
                                       W_q, W_k, w_v)
    # approx reciprocal in the finalize step -> relaxed (but still tight) tolerance
    np.testing.assert_allclose(np.asarray(out), np.asarray(ref), rtol=2e-3, atol=2e-3)

    print("KERNEL_OK")
</pallas_src>

<mosaic_0001>
module attributes {stable_mosaic.version = 11 : i64} {
  func.func @_proj_kernel(%arg0: i32, %arg1: memref<8x20xf32, #tpu.memory_space<vmem>>, %arg2: memref<20x32xf32, #tpu.memory_space<vmem>>, %arg3: memref<8x32xf32, #tpu.memory_space<vmem>>) attributes {dimension_semantics = [#tpu.dimension_semantics<parallel>], iteration_bounds = array<i64: 1>, scalar_prefetch = 0 : i64, scratch_operands = 0 : i64, tpu.core_type = #tpu.core_type<tc>, window_params = [{transform_indices = @transform_0, window_bounds = array<i64: 8, 20>}, {pipeline_mode = #tpu.pipeline_mode<synchronous>, transform_indices = @transform_1, window_bounds = array<i64: 20, 32>}, {transform_indices = @transform_2, window_bounds = array<i64: 8, 32>}]} {
    %c0 = arith.constant 0 : index
    %c0_0 = arith.constant 0 : index
    %0 = vector.load %arg1[%c0, %c0_0] : memref<8x20xf32, #tpu.memory_space<vmem>>, vector<8x20xf32>
    %c0_1 = arith.constant 0 : index
    %c0_2 = arith.constant 0 : index
    %1 = vector.load %arg2[%c0_1, %c0_2] : memref<20x32xf32, #tpu.memory_space<vmem>>, vector<20x32xf32>
    %cst = arith.constant dense<0.000000e+00> : vector<8x32xf32>
    %2 = tpu.matmul %0, %1, %cst {dimension_numbers = #tpu.dot_dimension_numbers<[1], [0], [0], [1], [0, 0, 1, 1], [], []>} : vector<8x20xf32>, vector<20x32xf32>, vector<8x32xf32> -> vector<8x32xf32>
    %c0_3 = arith.constant 0 : index
    %c0_4 = arith.constant 0 : index
    %3 = vector.load %arg3[%c0_3, %c0_4] : memref<8x32xf32, #tpu.memory_space<vmem>>, vector<8x32xf32>
    tpu.vector_store %arg3[%c0_3, %c0_4], %2 {strides = array<i32>} : memref<8x32xf32, #tpu.memory_space<vmem>>, vector<8x32xf32>,
    return
  }
  func.func @transform_0(%arg0: i32) -> (i32, i32) {
    %c0_i32 = arith.constant 0 : i32
    %c0_i32_0 = arith.constant 0 : i32
    return %arg0, %c0_i32 : i32, i32
  }
  func.func @transform_1(%arg0: i32) -> (i32, i32) {
    %c0_i32 = arith.constant 0 : i32
    %c0_i32_0 = arith.constant 0 : i32
    %c0_i32_1 = arith.constant 0 : i32
    return %c0_i32, %c0_i32_0 : i32, i32
  }
  func.func @transform_2(%arg0: i32) -> (i32, i32) {
    %c0_i32 = arith.constant 0 : i32
    %c0_i32_0 = arith.constant 0 : i32
    return %arg0, %c0_i32 : i32, i32
  }
}

</mosaic_0001>

<llo_original>
// kernel: tpu_custom_call.1
$region0: #{tpu_custom_call.1}
  #allocation0 [shape = 'u32[]', space=smem, size = 0x4, offset = 0x4, fixed_abs, tag = 'smem constant byte address 0x4 - core index']
  #allocation1 [shape = 'u32[144,128]{1,0:T(1,128)}', space=vmem, size = 0x12000, scoped, tag = 'internal scratch']
  %s0 = inlined_call_operand.hbm [shape: f32[8,20], index: 0, kind: input, shape index: {}]
  %s1 = inlined_call_operand.hbm [shape: f32[20,32], index: 1, kind: input, shape index: {}]
  %s2 = inlined_call_operand.hbm [shape: f32[8,32], index: 2, kind: output, shape index: {}]
  %s3 = sld [smem:[#allocation0]]
  $region26: #{tpu_custom_call.1} parent=0
    _
  %s5 = ssub.s32 1, %s3
  %s6 = scalar_select 0, %s5, %s3
  $region1: #{tpu_custom_call.1} parent=0
    #allocation2 [shape = 'u8[4096]{0}', space=vmem, size = 0x1000, scoped, tag = 'input window, operand 0, single buffered']
    #allocation3 [shape = 's32[1]{0}', space=sflag, size = 0x4, scoped, tag = 'scoped memory for tpu_custom_call.1']
    #allocation4 [shape = 's32[1]{0}', space=sflag, size = 0x4, scoped, tag = 'scoped memory for tpu_custom_call.1']
    #allocation5 [shape = 'u8[12288]{0}', space=vmem, size = 0x3000, scoped, tag = 'input window, operand 1, single buffered']
    #allocation6 [shape = 's32[1]{0}', space=sflag, size = 0x4, scoped, tag = 'scoped memory for tpu_custom_call.1']
    #allocation7 [shape = 'u8[4096]{0}', space=vmem, size = 0x1000, scoped, tag = 'output window, operand 0, single buffered']
    %7 = vsyncpa [#allocation3], 0
    %8 = vsyncpa [#allocation6], 0
    %9 = vsyncpa [#allocation4], 0
    // Predicated region
    $region2: #{tpu_custom_call.1} parent=1 // pred_check
      _
    $region3: #{tpu_custom_call.1} parent=1 // pred_check_branch
      %11 = sbr.rel (0) target = $region5
    $region4: #{tpu_custom_call.1} parent=1 // pred_region
      %s13 = ssub.s32 128, 128
      %14 = vsyncadd [#allocation3], %s13
      %s16 = sshll.u32 [#allocation2], 4
      %s17 = int_to_ptr.vmem [resolvable:$true] %s16
      %19 = dma.hbm_to_vmem [thread:$0]  %s0, 128, %s17, [#allocation3]
    $region5: #{tpu_custom_call.1} parent=1 // pred_fallthru
      _
    // Predicated region
    $region6: #{tpu_custom_call.1} parent=1 // pred_check
      _
    $region7: #{tpu_custom_call.1} parent=1 // pred_check_branch
      %21 = sbr.rel (0) target = $region9
    $region8: #{tpu_custom_call.1} parent=1 // pred_region
      %s23 = ssub.s32 384, 384
      %24 = vsyncadd [#allocation6], %s23
      %s25 = sshll.u32 [#allocation5], 4
      %s26 = int_to_ptr.vmem [resolvable:$true] %s25
      %31 = dma.hbm_to_vmem [thread:$0]  %s1, 384, %s26, [#allocation6], 128, 128, 8
    $region9: #{tpu_custom_call.1} parent=1 // pred_fallthru
      _
    // Predicated region
    $region10: #{tpu_custom_call.1} parent=1 // pred_check
      _
    $region11: #{tpu_custom_call.1} parent=1 // pred_check_branch
      %33 = sbr.rel (0) target = $region13
    $region12: #{tpu_custom_call.1} parent=1 // pred_region
      %34 = dma.done [#allocation3], 128
    $region13: #{tpu_custom_call.1} parent=1 // pred_fallthru
      _
    // Predicated region
    $region14: #{tpu_custom_call.1} parent=1 // pred_check
      _
    $region15: #{tpu_custom_call.1} parent=1 // pred_check_branch
      %36 = sbr.rel (0) target = $region17
    $region16: #{tpu_custom_call.1} parent=1 // pred_region
      %37 = dma.done [#allocation6], 384
    $region17: #{tpu_custom_call.1} parent=1 // pred_fallthru
      _
    %v38 = vld [vmem:[#allocation2] sm:$0xff]
    %v39 = vld [vmem:[#allocation5] sm:$0xff]
    %v40 = vld [vmem:[#allocation5 + $0x8] sm:$0xff]
    %v41 = vld [vmem:[#allocation5 + $0x10] sm:$0xf]
    %vm42 = vcmask 162816
    %v44 = vsel %vm42, %v38, 0
    %vm46 = vcmask 1043456
    %v48 = vsel %vm46, %v41, 0
    %50 = vmatprep.subr.mxu0 0.0
    %51 = vmatpush1.msra.mxu0 %v39
    %52 = vmatprep.subr.mxu0 0.0
    %53 = vmatpush1.msra.mxu0 %v40
    %54 = vmatprep.subr.mxu0 0.0
    %55 = vmatpush1.msra.mxu0 %v48
    %56 = vmatprep.subr.mxu0 0.0
    %57 = vmatpush1.msra.mxu0 0.0
    %58 = vmatprep.subr.mxu0 0.0
    %59 = vmatpush1.msra.mxu0 0.0
    %60 = vmatprep.subr.mxu0 0.0
    %61 = vmatpush1.msra.mxu0 0.0
    %62 = vmatprep.subr.mxu0 0.0
    %63 = vmatpush1.msra.mxu0 0.0
    %64 = vmatprep.subr.mxu0 0.0
    %65 = vmatpush1.msra.mxu0 0.0
    %66 = vmatprep.subr.mxu0 0.0
    %67 = vmatpush1.msra.mxu0 0.0
    %68 = vmatprep.subr.mxu0 0.0
    %69 = vmatpush1.msra.mxu0 0.0
    %70 = vmatprep.subr.mxu0 0.0
    %71 = vmatpush1.msra.mxu0 0.0
    %72 = vmatprep.subr.mxu0 0.0
    %73 = vmatpush1.msra.mxu0 0.0
    %74 = vmatprep.subr.mxu0 0.0
    %75 = vmatpush1.msra.mxu0 0.0
    %76 = vmatprep.subr.mxu0 0.0
    %77 = vmatpush1.msra.mxu0 0.0
    %78 = vmatprep.subr.mxu0 0.0
    %79 = vmatpush1.msra.mxu0 0.0
    %80 = vmatprep.subr.mxu0 0.0
    %81 = vmatpush1.msra.mxu0 0.0
    %82 = vmatprep.subr.mxu0 0.0
    %83 = vmatpush1.msra.mxu0 0.0
    %84 = vmatprep.subr.mxu0 0.0
    %85 = vmatpush1.msra.mxu0 0.0
    %86 = vmatprep.subr.mxu0 0.0
    %87 = vmatpush1.msra.mxu0 0.0
    %88 = vmatprep.subr.mxu0 0.0
    %89 = vmatpush1.msra.mxu0 0.0
    %90 = vmatprep.subr.mxu0 0.0
    %91 = vmatpush1.msra.mxu0 0.0
    %92 = vmatprep.subr.mxu0 0.0
    %93 = vmatpush1.msra.mxu0 0.0
    %94 = vmatprep.subr.mxu0 0.0
    %95 = vmatpush1.msra.mxu0 0.0
    %96 = vmatprep.subr.mxu0 0.0
    %97 = vmatpush1.msra.mxu0 0.0
    %98 = vmatprep.subr.mxu0 0.0
    %99 = vmatpush1.msra.mxu0 0.0
    %100 = vmatprep.subr.mxu0 0.0
    %101 = vmatpush1.msra.mxu0 0.0
    %102 = vmatprep.subr.mxu0 0.0
    %103 = vmatpush1.msra.mxu0 0.0
    %104 = vmatprep.subr.mxu0 0.0
    %105 = vmatpush1.msra.mxu0 0.0
    %106 = vmatprep.subr.mxu0 0.0
    %107 = vmatpush1.msra.mxu0 0.0
    %108 = vmatprep.subr.mxu0 0.0
    %109 = vmatpush1.msra.mxu0 0.0
    %110 = vmatprep.subr.mxu0 0.0
    %111 = vmatpush1.msra.mxu0 0.0
    %112 = vmatprep.subr.mxu0 0.0
    %113 = vmatpush1.msra.mxu0 0.0
    %114 = vmatprep.mubr.f32.mxu0 0.0
    %115 = vmatmul.mubr.f32.gmra.mrb[0].mxu0 %v44
    %v116 = vpop.f32.mrb[0].mxu0
    %v117 = vadd.f32 0.0, %v116
    %v118 = vpop.f32.mrb[0].mxu0
    %119 = vdwg.mxu0
    %vm120 = vcmask 261120
    %121 = vst.msk [vmem:[#allocation7] sm:$0xff] %vm120, %v117
    // Predicated region
    $region18: #{tpu_custom_call.1} parent=1 // pred_check
      _
    $region19: #{tpu_custom_call.1} parent=1 // pred_check_branch
      %123 = sbr.rel (0) target = $region21
    $region20: #{tpu_custom_call.1} parent=1 // pred_region
      %s125 = ssub.s32 128, 128
      %126 = vsyncadd [#allocation4], %s125
      %s128 = sshll.u32 [#allocation7], 4
      %s129 = int_to_ptr.vmem [resolvable:$true] %s128
      %131 = dma.vmem_to_hbm [thread:$0]  %s129, 128, %s2, [#allocation4]
    $region21: #{tpu_custom_call.1} parent=1 // pred_fallthru
      _
    // Predicated region
    $region22: #{tpu_custom_call.1} parent=1 // pred_check
      _
    $region23: #{tpu_custom_call.1} parent=1 // pred_check_branch
      %133 = sbr.rel (0) target = $region25
    $region24: #{tpu_custom_call.1} parent=1 // pred_region
      %134 = dma.done [#allocation4], 128
    $region25: #{tpu_custom_call.1} parent=1 // pred_fallthru
      _
    %135 = vsyncpa [#allocation3], 1
    %136 = vsyncpa [#allocation6], 1
    %137 = vsyncpa [#allocation4], 1

</llo_original>
